<compile_context>
chip_gen: v7x
topology: tpu7x:2x2x1
jax: 0.10.0
libtpu: 0.0.40
codegen_flags: <defaults>
</compile_context>

<pallas_src>
import math

import jax
import jax.numpy as jnp
from jax import lax
from jax.experimental import pallas as pl
from jax.experimental.pallas import tpu as pltpu

LANES = 128
SUBLANES = 8
STRIP_ROWS = 64           # rows per in-kernel strip (8 f32 vregs / stream)
MAX_BLOCK_ROWS = 4096     # 2 MiB per f32 stream per block


def _cdiv(a, b):
    return -(-a // b)


def _round_up(x, m):
    return ((x + m - 1) // m) * m


def _choose_block_rows(rows):
    """Balanced tile size: waste bounded to < one strip, >=2 (even) tiles when
    the input allows it (v7x megacore), capped for v7x's 64 MiB VMEM."""
    target_tiles = max(2, _cdiv(rows, MAX_BLOCK_ROWS))
    if target_tiles % 2:
        target_tiles += 1
    block_rows = _round_up(max(1, _cdiv(rows, target_tiles)), STRIP_ROWS)
    block_rows = min(block_rows, MAX_BLOCK_ROWS, _round_up(rows, SUBLANES))
    return max(SUBLANES, block_rows)


def _bce_elementwise(x, t, eps, hard_target):
    logit = jnp.clip(x, eps, 1.0 - eps)
    if hard_target:
        # Targets known to be {0,1}: one log + one select per element.
        return -jnp.log(jnp.where(t > 0.5, logit, 1.0 - logit))
    return -(t * jnp.log(logit) + (1.0 - t) * jnp.log(1.0 - logit))


def _make_mean_partial_kernel(eps, tail_valid, block_rows, hard_target):
    """Each grid step writes an (8, 128) block of partial sums."""
    strip_rows = min(STRIP_ROWS, block_rows)
    assert block_rows % strip_rows == 0 and strip_rows % SUBLANES == 0
    n_strips = block_rows // strip_rows

    def strip_loss(x_ref, t_ref, s):
        start = pl.multiple_of(s * strip_rows, strip_rows)
        x = x_ref[pl.ds(start, strip_rows), :].astype(jnp.float32)
        t = t_ref[pl.ds(start, strip_rows), :].astype(jnp.float32)
        return _bce_elementwise(x, t, eps, hard_target)

    def fold(v):
        # (strip_rows, 128) -> (8, 128): layout-preserving reshape + vreg adds.
        return jnp.sum(v.reshape(strip_rows // SUBLANES, SUBLANES, LANES), axis=0)

    def kernel(x_ref, t_ref, o_ref):
        i = pl.program_id(0)
        last = pl.num_programs(0) - 1
        zero = jnp.zeros((SUBLANES, LANES), jnp.float32)

        # All tiles except the last are fully valid: no mask work at all.
        @pl.when(i != last)
        def _():
            def body(s, acc):
                return acc + fold(strip_loss(x_ref, t_ref, s))
            o_ref[...] = lax.fori_loop(0, n_strips, body, zero)

        # Last tile: mask the ragged / padded tail with a tile-local constant.
        @pl.when(i == last)
        def _():
            row = lax.broadcasted_iota(jnp.int32, (strip_rows, LANES), 0)
            col = lax.broadcasted_iota(jnp.int32, (strip_rows, LANES), 1)
            local = row * LANES + col          # hoisted out of the strip loop

            def body(s, acc):
                loss = strip_loss(x_ref, t_ref, s)
                elem = local + s * (strip_rows * LANES)
                return acc + fold(jnp.where(elem < tail_valid, loss, 0.0))
            o_ref[...] = lax.fori_loop(0, n_strips, body, zero)

    return kernel


def _make_elementwise_kernel(eps, block_rows, hard_target, out_dtype):
    strip_rows = min(STRIP_ROWS, block_rows)
    assert block_rows % strip_rows == 0
    n_strips = block_rows // strip_rows

    def kernel(x_ref, t_ref, o_ref):
        @pl.loop(0, n_strips)
        def _(s):
            start = pl.multiple_of(s * strip_rows, strip_rows)
            x = x_ref[pl.ds(start, strip_rows), :].astype(jnp.float32)
            t = t_ref[pl.ds(start, strip_rows), :].astype(jnp.float32)
            loss = _bce_elementwise(x, t, eps, hard_target)
            o_ref[pl.ds(start, strip_rows), :] = loss.astype(out_dtype)

    return kernel


def bce_loss(inputs, target, eps=1e-07, if_mean=True, hard_target=False,
             out_dtype=None):
    """Pallas implementation of BCELoss.forward.

    inputs, target: arrays of identical shape (e.g. NCHW). Returns a scalar
    mean loss if if_mean, else the elementwise loss with input's shape.
    hard_target=True enables the single-log fast path (targets must be {0,1}).
    """
    orig_shape = inputs.shape
    n_valid = math.prod(orig_shape)
    if n_valid == 0:
        return jnp.float32(jnp.nan) if if_mean else jnp.zeros(orig_shape, jnp.float32)
    out_dtype = jnp.float32 if out_dtype is None else out_dtype

    x = inputs.reshape(-1)
    t = target.reshape(-1)
    rows = _cdiv(n_valid, LANES)

    lane_aligned = (n_valid % LANES == 0)
    if not lane_aligned:
        # Fallback only: pad to the next multiple of 128 lanes (the common
        # lane-aligned case pays no pad and no output slice).
        # TODO(synk): a fully pad-free ragged 1-D path would also cover this.
        pad = rows * LANES - n_valid
        x = jnp.pad(x, (0, pad))
        t = jnp.pad(t, (0, pad))
    x2 = x.reshape(rows, LANES)
    t2 = t.reshape(rows, LANES)

    block_rows = _choose_block_rows(rows)
    n_tiles = _cdiv(rows, block_rows)          # ragged grid: no block padding
    tail_valid = n_valid - (n_tiles - 1) * block_rows * LANES

    in_spec = pl.BlockSpec((block_rows, LANES), lambda i: (i, 0))
    cparams = pltpu.CompilerParams(
        dimension_semantics=("parallel",),
        vmem_limit_bytes=32 * 1024 * 1024,
    )
    in_bytes = n_valid * (x2.dtype.itemsize + t2.dtype.itemsize)
    n_trans = n_valid if hard_target else 2 * n_valid

    if if_mean:
        partials = pl.pallas_call(
            _make_mean_partial_kernel(eps, tail_valid, block_rows, hard_target),
            out_shape=jax.ShapeDtypeStruct((n_tiles * SUBLANES, LANES), jnp.float32),
            grid_spec=pltpu.PrefetchScalarGridSpec(
                num_scalar_prefetch=0,
                grid=(n_tiles,),
                in_specs=[in_spec, in_spec],
                out_specs=pl.BlockSpec((SUBLANES, LANES), lambda i: (i, 0)),
            ),
            compiler_params=cparams,
            cost_estimate=pl.CostEstimate(
                flops=8 * n_valid,
                transcendentals=n_trans,
                bytes_accessed=in_bytes + n_tiles * SUBLANES * LANES * 4),
        )(x2, t2)
        # Tiny finish: cross-lane reduce of n_tiles*8*128 partials + mean.
        return jnp.sum(partials) * jnp.float32(1.0 / n_valid)

    out2 = pl.pallas_call(
        _make_elementwise_kernel(eps, block_rows, hard_target, out_dtype),
        out_shape=jax.ShapeDtypeStruct((rows, LANES), out_dtype),
        grid_spec=pltpu.PrefetchScalarGridSpec(
            num_scalar_prefetch=0,
            grid=(n_tiles,),
            in_specs=[in_spec, in_spec],
            out_specs=pl.BlockSpec((block_rows, LANES), lambda i: (i, 0)),
        ),
        compiler_params=cparams,
        cost_estimate=pl.CostEstimate(
            flops=8 * n_valid,
            transcendentals=n_trans,
            bytes_accessed=in_bytes + n_valid * jnp.dtype(out_dtype).itemsize),
    )(x2, t2)
    if lane_aligned:
        return out2.reshape(orig_shape)        # free metadata reshape
    return out2.reshape(-1)[:n_valid].reshape(orig_shape)


def bce_loss_ref(inputs, target, eps=1e-07, if_mean=True):
    logit = jnp.clip(inputs.astype(jnp.float32), eps, 1.0 - eps)
    t = target.astype(jnp.float32)
    loss = -(t * jnp.log(logit) + (1.0 - t) * jnp.log(1.0 - logit))
    return loss.mean() if if_mean else loss


if __name__ == "__main__":
    key = jax.random.PRNGKey(0)
    k1, k2 = jax.random.split(key)
    # NCHW: batch=2, channels=4, spatial=16x16; inputs are probabilities.
    x = jax.random.uniform(k1, (2, 4, 16, 16), dtype=jnp.float32)
    tgt = (jax.random.uniform(k2, (2, 4, 16, 16)) > 0.5).astype(jnp.float32)

    out_mean = bce_loss(x, tgt, if_mean=True)
    out_elem = bce_loss(x, tgt, if_mean=False)
    out_hard = bce_loss(x, tgt, if_mean=True, hard_target=True)
    jax.block_until_ready((out_mean, out_elem, out_hard))

    ref_mean = bce_loss_ref(x, tgt, if_mean=True)
    ref_elem = bce_loss_ref(x, tgt, if_mean=False)

    assert out_elem.shape == (2, 4, 16, 16)
    assert jnp.allclose(out_mean, ref_mean, rtol=1e-5, atol=1e-6), (out_mean, ref_mean)
    assert jnp.allclose(out_hard, ref_mean, rtol=1e-5, atol=1e-6), (out_hard, ref_mean)
    assert jnp.allclose(out_elem, ref_elem, rtol=1e-5, atol=1e-6)

    # Non-lane-aligned size exercises the pad-to-128 fallback + tail masking.
    k3, k4 = jax.random.split(k1)
    x_odd = jax.random.uniform(k3, (3, 5, 7, 11), dtype=jnp.float32)
    t_odd = (jax.random.uniform(k4, (3, 5, 7, 11)) > 0.5).astype(jnp.float32)
    m_odd = bce_loss(x_odd, t_odd, if_mean=True)
    e_odd = bce_loss(x_odd, t_odd, if_mean=False)
    jax.block_until_ready((m_odd, e_odd))
    assert jnp.allclose(m_odd, bce_loss_ref(x_odd, t_odd, if_mean=True),
                        rtol=1e-5, atol=1e-6)
    assert jnp.allclose(e_odd, bce_loss_ref(x_odd, t_odd, if_mean=False),
                        rtol=1e-5, atol=1e-6)

    print("KERNEL_OK")
</pallas_src>

<mosaic_0001>
module attributes {stable_mosaic.version = 11 : i64} {
  func.func @kernel(%arg0: i32, %arg1: memref<16x128xf32, #tpu.memory_space<vmem>>, %arg2: memref<16x128xf32, #tpu.memory_space<vmem>>, %arg3: memref<8x128xf32, #tpu.memory_space<vmem>>) attributes {dimension_semantics = [#tpu.dimension_semantics<parallel>], iteration_bounds = array<i64: 1>, scalar_prefetch = 0 : i64, scratch_operands = 0 : i64, tpu.core_type = #tpu.core_type<tc>, window_params = [{transform_indices = @transform_0, window_bounds = array<i64: 16, 128>}, {transform_indices = @transform_1, window_bounds = array<i64: 16, 128>}, {transform_indices = @transform_2, window_bounds = array<i64: 8, 128>}]} {
    %cst = arith.constant 0.000000e+00 : f32
    %0 = vector.broadcast %cst : f32 to vector<8x128xf32>
    %c0_i32 = arith.constant 0 : i32
    %1 = arith.cmpi ne, %arg0, %c0_i32 : i32
    %2 = arith.extui %1 : i1 to i32
    %c0_i32_0 = arith.constant 0 : i32
    %3 = arith.cmpi ne, %2, %c0_i32_0 : i32
    scf.if %3 {
      %c0_i32_3 = arith.constant 0 : i32
      %c16_i32 = arith.constant 16 : i32
      %7 = arith.muli %c0_i32_3, %c16_i32 : i32
      %8 = tpu.assume_multiple %7, 16 : i32
      %9 = arith.index_cast %8 : i32 to index
      %c0 = arith.constant 0 : index
      %10 = vector.load %arg1[%9, %c0] : memref<16x128xf32, #tpu.memory_space<vmem>>, vector<16x128xf32>
      %11 = arith.index_cast %8 : i32 to index
      %c0_4 = arith.constant 0 : index
      %12 = vector.load %arg2[%11, %c0_4] : memref<16x128xf32, #tpu.memory_space<vmem>>, vector<16x128xf32>
      %cst_5 = arith.constant 1.000000e-07 : f32
      %cst_6 = arith.constant 0.99999988 : f32
      %13 = vector.broadcast %cst_5 : f32 to vector<16x128xf32>
      %14 = arith.maximumf %13, %10 : vector<16x128xf32>
      %15 = vector.broadcast %cst_6 : f32 to vector<16x128xf32>
      %16 = arith.minimumf %15, %14 : vector<16x128xf32>
      %17 = math.log %16 : vector<16x128xf32>
      %18 = arith.mulf %12, %17 : vector<16x128xf32>
      %cst_7 = arith.constant 1.000000e+00 : f32
      %19 = vector.broadcast %cst_7 : f32 to vector<16x128xf32>
      %20 = arith.subf %19, %12 : vector<16x128xf32>
      %cst_8 = arith.constant 1.000000e+00 : f32
      %21 = vector.broadcast %cst_8 : f32 to vector<16x128xf32>
      %22 = arith.subf %21, %16 : vector<16x128xf32>
      %23 = math.log %22 : vector<16x128xf32>
      %24 = arith.mulf %20, %23 : vector<16x128xf32>
      %25 = arith.addf %18, %24 : vector<16x128xf32>
      %cst_9 = arith.constant 0.000000e+00 : f32
      %26 = vector.broadcast %cst_9 : f32 to vector<16x128xf32>
      %27 = arith.subf %26, %25 : vector<16x128xf32>
      %28 = vector.shape_cast %27 : vector<16x128xf32> to vector<2x8x128xf32>
      %cst_10 = arith.constant dense<0.000000e+00> : vector<8x128xf32>
      %29 = vector.multi_reduction <add>, %28, %cst_10 [0] : vector<2x8x128xf32> to vector<8x128xf32>
      %30 = arith.addf %0, %29 : vector<8x128xf32>
      %c1_i32 = arith.constant 1 : i32
      %c0_11 = arith.constant 0 : index
      %c0_12 = arith.constant 0 : index
      %31 = vector.load %arg3[%c0_11, %c0_12] : memref<8x128xf32, #tpu.memory_space<vmem>>, vector<8x128xf32>
      tpu.vector_store %arg3[%c0_11, %c0_12], %30 {strides = array<i32>} : memref<8x128xf32, #tpu.memory_space<vmem>>, vector<8x128xf32>,
    } else {
    }
    %c0_i32_1 = arith.constant 0 : i32
    %4 = arith.cmpi eq, %arg0, %c0_i32_1 : i32
    %5 = arith.extui %4 : i1 to i32
    %c0_i32_2 = arith.constant 0 : i32
    %6 = arith.cmpi ne, %5, %c0_i32_2 : i32
    scf.if %6 {
      %7 = tpu.iota {dimensions = array<i32: 0>} : vector<16x128xi32>
      %8 = tpu.iota {dimensions = array<i32: 1>} : vector<16x128xi32>
      %c128_i32 = arith.constant 128 : i32
      %9 = vector.broadcast %c128_i32 : i32 to vector<16x128xi32>
      %10 = arith.muli %7, %9 : vector<16x128xi32>
      %11 = arith.addi %10, %8 : vector<16x128xi32>
      %c0_i32_3 = arith.constant 0 : i32
      %c16_i32 = arith.constant 16 : i32
      %12 = arith.muli %c0_i32_3, %c16_i32 : i32
      %13 = tpu.assume_multiple %12, 16 : i32
      %14 = arith.index_cast %13 : i32 to index
      %c0 = arith.constant 0 : index
      %15 = vector.load %arg1[%14, %c0] : memref<16x128xf32, #tpu.memory_space<vmem>>, vector<16x128xf32>
      %16 = arith.index_cast %13 : i32 to index
      %c0_4 = arith.constant 0 : index
      %17 = vector.load %arg2[%16, %c0_4] : memref<16x128xf32, #tpu.memory_space<vmem>>, vector<16x128xf32>
      %cst_5 = arith.constant 1.000000e-07 : f32
      %cst_6 = arith.constant 0.99999988 : f32
      %18 = vector.broadcast %cst_5 : f32 to vector<16x128xf32>
      %19 = arith.maximumf %18, %15 : vector<16x128xf32>
      %20 = vector.broadcast %cst_6 : f32 to vector<16x128xf32>
      %21 = arith.minimumf %20, %19 : vector<16x128xf32>
      %22 = math.log %21 : vector<16x128xf32>
      %23 = arith.mulf %17, %22 : vector<16x128xf32>
      %cst_7 = arith.constant 1.000000e+00 : f32
      %24 = vector.broadcast %cst_7 : f32 to vector<16x128xf32>
      %25 = arith.subf %24, %17 : vector<16x128xf32>
      %cst_8 = arith.constant 1.000000e+00 : f32
      %26 = vector.broadcast %cst_8 : f32 to vector<16x128xf32>
      %27 = arith.subf %26, %21 : vector<16x128xf32>
      %28 = math.log %27 : vector<16x128xf32>
      %29 = arith.mulf %25, %28 : vector<16x128xf32>
      %30 = arith.addf %23, %29 : vector<16x128xf32>
      %cst_9 = arith.constant 0.000000e+00 : f32
      %31 = vector.broadcast %cst_9 : f32 to vector<16x128xf32>
      %32 = arith.subf %31, %30 : vector<16x128xf32>
      %c2048_i32 = arith.constant 2048 : i32
      %33 = arith.muli %c0_i32_3, %c2048_i32 : i32
      %34 = vector.broadcast %33 : i32 to vector<16x128xi32>
      %35 = arith.addi %11, %34 : vector<16x128xi32>
      %c2048_i32_10 = arith.constant 2048 : i32
      %36 = vector.broadcast %c2048_i32_10 : i32 to vector<16x128xi32>
      %37 = arith.cmpi slt, %35, %36 : vector<16x128xi32>
      %cst_11 = arith.constant 0.000000e+00 : f32
      %38 = vector.broadcast %cst_11 : f32 to vector<16x128xf32>
      %39 = arith.select %37, %32, %38 : vector<16x128xi1>, vector<16x128xf32>
      %40 = vector.shape_cast %39 : vector<16x128xf32> to vector<2x8x128xf32>
      %cst_12 = arith.constant dense<0.000000e+00> : vector<8x128xf32>
      %41 = vector.multi_reduction <add>, %40, %cst_12 [0] : vector<2x8x128xf32> to vector<8x128xf32>
      %42 = arith.addf %0, %41 : vector<8x128xf32>
      %c1_i32 = arith.constant 1 : i32
      %c0_13 = arith.constant 0 : index
      %c0_14 = arith.constant 0 : index
      %43 = vector.load %arg3[%c0_13, %c0_14] : memref<8x128xf32, #tpu.memory_space<vmem>>, vector<8x128xf32>
      tpu.vector_store %arg3[%c0_13, %c0_14], %42 {strides = array<i32>} : memref<8x128xf32, #tpu.memory_space<vmem>>, vector<8x128xf32>,
    } else {
    }
    return
  }
  func.func @transform_0(%arg0: i32) -> (i32, i32) {
    %c0_i32 = arith.constant 0 : i32
    %c0_i32_0 = arith.constant 0 : i32
    return %arg0, %c0_i32 : i32, i32
  }
  func.func @transform_1(%arg0: i32) -> (i32, i32) {
    %c0_i32 = arith.constant 0 : i32
    %c0_i32_0 = arith.constant 0 : i32
    return %arg0, %c0_i32 : i32, i32
  }
  func.func @transform_2(%arg0: i32) -> (i32, i32) {
    %c0_i32 = arith.constant 0 : i32
    %c0_i32_0 = arith.constant 0 : i32
    return %arg0, %c0_i32 : i32, i32
  }
}

</mosaic_0001>

<llo_original>
// kernel: tpu_custom_call.1
$region0: #{tpu_custom_call.1}
  #allocation0 [shape = 'u32[]', space=smem, size = 0x4, offset = 0x4, fixed_abs, tag = 'smem constant byte address 0x4 - core index']
  #allocation1 [shape = 'u32[144,128]{1,0:T(1,128)}', space=vmem, size = 0x12000, scoped, tag = 'internal scratch']
  %s0 = inlined_call_operand.hbm [shape: f32[16,128], index: 0, kind: input, shape index: {}]
  %s1 = inlined_call_operand.hbm [shape: f32[16,128], index: 1, kind: input, shape index: {}]
  %s2 = inlined_call_operand.hbm [shape: f32[8,128], index: 2, kind: output, shape index: {}]
  %s3 = sld [smem:[#allocation0]]
  $region34: #{tpu_custom_call.1} parent=0
    _
  %s5 = ssub.s32 1, %s3
  %s6 = scalar_select 0, %s5, %s3
  $region1: #{tpu_custom_call.1} parent=0
    #allocation2 [shape = 'u8[8192]{0}', space=vmem, size = 0x2000, scoped, tag = 'input window, operand 0, single buffered']
    #allocation3 [shape = 's32[1]{0}', space=sflag, size = 0x4, scoped, tag = 'scoped memory for tpu_custom_call.1']
    #allocation4 [shape = 's32[1]{0}', space=sflag, size = 0x4, scoped, tag = 'scoped memory for tpu_custom_call.1']
    #allocation5 [shape = 'u8[8192]{0}', space=vmem, size = 0x2000, scoped, tag = 'input window, operand 1, single buffered']
    #allocation6 [shape = 's32[1]{0}', space=sflag, size = 0x4, scoped, tag = 'scoped memory for tpu_custom_call.1']
    #allocation7 [shape = 'u8[4096]{0}', space=vmem, size = 0x1000, scoped, tag = 'output window, operand 0, single buffered']
    %7 = vsyncpa [#allocation3], 0
    %8 = vsyncpa [#allocation6], 0
    %9 = vsyncpa [#allocation4], 0
    // Predicated region
    $region2: #{tpu_custom_call.1} parent=1 // pred_check
      _
    $region3: #{tpu_custom_call.1} parent=1 // pred_check_branch
      %11 = sbr.rel (0) target = $region5
    $region4: #{tpu_custom_call.1} parent=1 // pred_region
      %s13 = ssub.s32 256, 256
      %14 = vsyncadd [#allocation3], %s13
      %s15 = sshll.u32 [#allocation2], 4
      %s16 = int_to_ptr.vmem [resolvable:$true] %s15
      %21 = dma.hbm_to_vmem [thread:$0]  %s0, 256, %s16, [#allocation3], 128, 128, 8
    $region5: #{tpu_custom_call.1} parent=1 // pred_fallthru
      _
    // Predicated region
    $region6: #{tpu_custom_call.1} parent=1 // pred_check
      _
    $region7: #{tpu_custom_call.1} parent=1 // pred_check_branch
      %23 = sbr.rel (0) target = $region9
    $region8: #{tpu_custom_call.1} parent=1 // pred_region
      %s25 = ssub.s32 256, 256
      %26 = vsyncadd [#allocation6], %s25
      %s27 = sshll.u32 [#allocation5], 4
      %s28 = int_to_ptr.vmem [resolvable:$true] %s27
      %33 = dma.hbm_to_vmem [thread:$0]  %s1, 256, %s28, [#allocation6], 128, 128, 8
    $region9: #{tpu_custom_call.1} parent=1 // pred_fallthru
      _
    // Predicated region
    $region10: #{tpu_custom_call.1} parent=1 // pred_check
      _
    $region11: #{tpu_custom_call.1} parent=1 // pred_check_branch
      %35 = sbr.rel (0) target = $region13
    $region12: #{tpu_custom_call.1} parent=1 // pred_region
      %36 = dma.done [#allocation3], 256
    $region13: #{tpu_custom_call.1} parent=1 // pred_fallthru
      _
    // Predicated region
    $region14: #{tpu_custom_call.1} parent=1 // pred_check
      _
    $region15: #{tpu_custom_call.1} parent=1 // pred_check_branch
      %38 = sbr.rel (0) target = $region17
    $region16: #{tpu_custom_call.1} parent=1 // pred_region
      %39 = dma.done [#allocation6], 256
    $region17: #{tpu_custom_call.1} parent=1 // pred_fallthru
      _
    %p40 = scmp.ne.s32.totalorder 0, 0
    // Predicated region
    $region18: #{tpu_custom_call.1} parent=1 // pred_check
      %p41 = pneg %p40
    $region19: #{tpu_custom_call.1} parent=1 // pred_check_branch
      %43 = sbr.rel (%p41) target = $region21
    $region20: #{tpu_custom_call.1} parent=1 // pred_region
      %v44 = vld [vmem:[#allocation2] sm:$0xff]
      %v45 = vld [vmem:[#allocation2 + $0x8] sm:$0xff]
      %v46 = vld [vmem:[#allocation5] sm:$0xff]
      %v47 = vld [vmem:[#allocation5 + $0x8] sm:$0xff]
      %v48 = vmax.f32 %v44, 1e-07
      %v49 = vmax.f32 %v45, 1e-07
      %v50 = vmin.f32 %v48, 0.9999999
      %v51 = vmin.f32 %v49, 0.9999999
      %v52 = vlog2.pop %v50
      %v53 = vmul.f32 %v52, 0.6931472
      %v54 = vlog2.pop %v51
      %v55 = vmul.f32 %v54, 0.6931472
      %v56 = vmul.f32 %v46, %v53
      %v57 = vmul.f32 %v47, %v55
      %v58 = vsub.f32 1.0, %v46
      %v59 = vsub.f32 1.0, %v47
      %v60 = vsub.f32 1.0, %v50
      %v61 = vsub.f32 1.0, %v51
      %v62 = vlog2.pop %v60
      %v63 = vmul.f32 %v62, 0.6931472
      %v64 = vlog2.pop %v61
      %v65 = vmul.f32 %v64, 0.6931472
      %v66 = vmul.f32 %v58, %v63
      %v67 = vmul.f32 %v59, %v65
      %v68 = vadd.f32 %v56, %v66
      %v69 = vadd.f32 %v57, %v67
      %v70 = vsub.f32 0.0, %v68
      %v71 = vsub.f32 0.0, %v69
      %v72 = vadd.f32 %v70, %v71
      %v73 = vadd.f32 %v72, 0.0
      %74 = vst [vmem:[#allocation7] sm:$0xff] %v73
    $region21: #{tpu_custom_call.1} parent=1 // pred_fallthru
      _
    %p75 = scmp.eq.s32.totalorder 0, 0
    // Predicated region
    $region22: #{tpu_custom_call.1} parent=1 // pred_check
      %p76 = pneg %p75
    $region23: #{tpu_custom_call.1} parent=1 // pred_check_branch
      %78 = sbr.rel (%p76) target = $region25
    $region24: #{tpu_custom_call.1} parent=1 // pred_region
      %v79 = vlaneseq
      %v80 = vshrl.u32 %v79, 7
      %v81 = vadd.s32 %v80, 8
      %v82 = vlaneseq
      %v83 = vand.u32 %v82, 127
      %v84 = vmul.u32 %v80, 128
      %v85 = vmul.u32 %v81, 128
      %v86 = vadd.s32 %v84, %v83
      %v87 = vadd.s32 %v85, %v83
      %v88 = vld [vmem:[#allocation2] sm:$0xff]
      %v89 = vld [vmem:[#allocation2 + $0x8] sm:$0xff]
      %v90 = vld [vmem:[#allocation5] sm:$0xff]
      %v91 = vld [vmem:[#allocation5 + $0x8] sm:$0xff]
      %v92 = vmax.f32 %v88, 1e-07
      %v93 = vmax.f32 %v89, 1e-07
      %v94 = vmin.f32 %v92, 0.9999999
      %v95 = vmin.f32 %v93, 0.9999999
      %v96 = vlog2.pop %v94
      %v97 = vmul.f32 %v96, 0.6931472
      %v98 = vlog2.pop %v95
      %v99 = vmul.f32 %v98, 0.6931472
      %v100 = vmul.f32 %v90, %v97
      %v101 = vmul.f32 %v91, %v99
      %v102 = vsub.f32 1.0, %v90
      %v103 = vsub.f32 1.0, %v91
      %v104 = vsub.f32 1.0, %v94
      %v105 = vsub.f32 1.0, %v95
      %v106 = vlog2.pop %v104
      %v107 = vmul.f32 %v106, 0.6931472
      %v108 = vlog2.pop %v105
      %v109 = vmul.f32 %v108, 0.6931472
      %v110 = vmul.f32 %v102, %v107
      %v111 = vmul.f32 %v103, %v109
      %v112 = vadd.f32 %v100, %v110
      %v113 = vadd.f32 %v101, %v111
      %v114 = vsub.f32 0.0, %v112
      %v115 = vsub.f32 0.0, %v113
      %vm116 = vcmp.lt.s32.totalorder %v86, 2048
      %vm117 = vcmp.lt.s32.totalorder %v87, 2048
      %v118 = vsel %vm116, %v114, 0.0
      %v119 = vsel %vm117, %v115, 0.0
      %v120 = vadd.f32 %v118, %v119
      %v121 = vadd.f32 %v120, 0.0
      %122 = vst [vmem:[#allocation7] sm:$0xff] %v121
    $region25: #{tpu_custom_call.1} parent=1 // pred_fallthru
      _
    // Predicated region
    $region26: #{tpu_custom_call.1} parent=1 // pred_check
      _
    $region27: #{tpu_custom_call.1} parent=1 // pred_check_branch
      %124 = sbr.rel (0) target = $region29
    $region28: #{tpu_custom_call.1} parent=1 // pred_region
      %s126 = ssub.s32 128, 128
      %127 = vsyncadd [#allocation4], %s126
      %s129 = sshll.u32 [#allocation7], 4
      %s130 = int_to_ptr.vmem [resolvable:$true] %s129
      %132 = dma.vmem_to_hbm [thread:$0]  %s130, 128, %s2, [#allocation4]
    $region29: #{tpu_custom_call.1} parent=1 // pred_fallthru
      _
    // Predicated region
    $region30: #{tpu_custom_call.1} parent=1 // pred_check
      _
    $region31: #{tpu_custom_call.1} parent=1 // pred_check_branch
      %134 = sbr.rel (0) target = $region33
    $region32: #{tpu_custom_call.1} parent=1 // pred_region
      %135 = dma.done [#allocation4], 128
    $region33: #{tpu_custom_call.1} parent=1 // pred_fallthru
      _
    %136 = vsyncpa [#allocation3], 1
    %137 = vsyncpa [#allocation6], 1
    %138 = vsyncpa [#allocation4], 1

</llo_original>
